<compile_context>
chip_gen: v6e
topology: v6e:2x2x1
jax: 0.10.0
libtpu: 0.0.40
codegen_flags: <defaults>
</compile_context>

<pallas_src>
import functools

import jax
import jax.numpy as jnp
from jax import lax
from jax.experimental import pallas as pl
from jax.experimental.pallas import tpu as pltpu

LANE = 128


def _round_up(x, m):
    return ((x + m - 1) // m) * m


# --------------------------------------------------------------------------------------
# Kernel body
# --------------------------------------------------------------------------------------
def _actor_kernel(obs_ref, eps_ref, w1o_ref, w1e_ref, b1_ref, w2_ref, b2_ref,
                  w3t_ref, b3t_ref, o_ref):
    """Fully fused 3-layer MLP for one batch tile.

    obs (bb, obs_dim) f32, eps (bb, eps_dim) bf16 (already scaled + clamped),
    weights bf16 zero-padded to lane multiples, biases f32.
    bf16 MXU operands with f32 accumulation; all elementwise math (bias, ReLU, tanh)
    stays in f32 (v5e VPU/EUP have no bf16 path).
    The last layer is computed transposed so the output tile is (act_pad8, bb):
    8 sublanes x bb lanes instead of bb x 128-lane padded f32 rows.
    """
    h = jnp.dot(obs_ref[...].astype(jnp.bfloat16), w1o_ref[...],
                preferred_element_type=jnp.float32)
    h = h + jnp.dot(eps_ref[...], w1e_ref[...],
                    preferred_element_type=jnp.float32)
    h = jnp.maximum(h + b1_ref[...], 0.0)                       # ReLU, f32
    h = jnp.dot(h.astype(jnp.bfloat16), w2_ref[...],
                preferred_element_type=jnp.float32)
    h = jnp.maximum(h + b2_ref[...], 0.0)                       # ReLU, f32
    # Last layer, transposed: contract feature axis of both operands ("NT" gemm):
    #   (act_pad8, h2p) x (bb, h2p) -> (act_pad8, bb)
    out_t = lax.dot_general(w3t_ref[...], h.astype(jnp.bfloat16),
                            dimension_numbers=(((1,), (1,)), ((), ())),
                            preferred_element_type=jnp.float32)
    o_ref[...] = jnp.tanh(out_t + b3t_ref[...]).astype(o_ref.dtype)


# --------------------------------------------------------------------------------------
# pallas_call wrapper
# --------------------------------------------------------------------------------------
def actor_forward_pallas(obs, eps, prepared_params, *, block_b=None):
    """Runs the whole MLP in one kernel. Returns transposed output (act_pad8, B) f32."""
    w1o, w1e, b1, w2, b2, w3t, b3t = prepared_params
    B, obs_dim = obs.shape
    eps_dim = eps.shape[1]
    act_pad8, h2p = w3t.shape
    h1p = w1o.shape[1]

    # Batch tile: large enough to amortize the ~0.35us per-grid-step fixed cost,
    # small enough for ~8 pipelined steps on large batches (>=4 per TC on v7x).
    if block_b is None:
        if B <= 1024:
            block_b = B                                   # single block, no masking
        else:
            block_b = min(2048, max(128, _round_up(-(-B // 8), 128)))
    block_b = int(block_b)
    grid = (pl.cdiv(B, block_b),)    # ragged last block: OOB reads feed masked lanes only

    flops = 2 * B * (obs_dim * h1p + eps_dim * h1p + h1p * h2p + h2p * act_pad8)
    bytes_accessed = (int(obs.size) * 4 + int(eps.size) * 2 + act_pad8 * B * 4
                      + sum(int(p.size) * p.dtype.itemsize for p in prepared_params))
    cost = pl.CostEstimate(flops=flops, transcendentals=B * act_pad8,
                           bytes_accessed=bytes_accessed)

    grid_spec = pl.GridSpec(
        grid=grid,
        in_specs=[
            pl.BlockSpec((block_b, obs_dim), lambda i: (i, 0)),
            pl.BlockSpec((block_b, eps_dim), lambda i: (i, 0)),
            pl.BlockSpec(w1o.shape, lambda i: (0, 0)),
            pl.BlockSpec(w1e.shape, lambda i: (0, 0)),
            pl.BlockSpec(b1.shape, lambda i: (0, 0)),
            pl.BlockSpec(w2.shape, lambda i: (0, 0)),
            pl.BlockSpec(b2.shape, lambda i: (0, 0)),
            pl.BlockSpec(w3t.shape, lambda i: (0, 0)),
            pl.BlockSpec(b3t.shape, lambda i: (0, 0)),
        ],
        out_specs=pl.BlockSpec((act_pad8, block_b), lambda i: (0, i)),
    )

    return pl.pallas_call(
        _actor_kernel,
        out_shape=jax.ShapeDtypeStruct((act_pad8, B), jnp.float32),
        grid_spec=grid_spec,
        compiler_params=pltpu.CompilerParams(dimension_semantics=("parallel",)),
        cost_estimate=cost,
    )(obs, eps, w1o, w1e, b1, w2, b2, w3t, b3t)


# --------------------------------------------------------------------------------------
# Parameters (mirrors _weight_init: xavier_normal(gain=0.01) weights, zero biases)
# --------------------------------------------------------------------------------------
def xavier_normal(key, fan_in, fan_out, gain=0.01, dtype=jnp.float32):
    # torch.nn.init.xavier_normal_ on a (out, in) Linear weight; stored here as (in, out).
    std = gain * jnp.sqrt(2.0 / (fan_in + fan_out))
    return std * jax.random.normal(key, (fan_in, fan_out), dtype=dtype)


def init_actor_params(key, obs_dim, act_dim, hidden_sizes, dtype=jnp.float32):
    epsilon_dim = act_dim * act_dim
    hidden_sizes = list(hidden_sizes)
    hidden_sizes[0] += epsilon_dim
    sizes = [obs_dim + epsilon_dim] + hidden_sizes + [act_dim]
    keys = jax.random.split(key, len(sizes) - 1)
    params = []
    for j in range(len(sizes) - 1):
        w = xavier_normal(keys[j], sizes[j], sizes[j + 1], gain=0.01, dtype=dtype)
        b = jnp.zeros((sizes[j + 1],), dtype=dtype)
        params += [w, b]
    return tuple(params), epsilon_dim


def prepare_params(raw_params, obs_dim, act_dim):
    """Split W1 into obs/eps halves, zero-pad hidden dims to multiples of 128, store the
    last layer transposed with act padded to a multiple of 8 sublanes, cast weights to
    bf16 (biases stay f32).  Zero padding keeps the transformation numerically exact."""
    w1, b1, w2, b2, w3, b3 = raw_params
    eps_dim = act_dim * act_dim
    d_in, h1 = w1.shape
    h2 = w2.shape[1]
    d_out = w3.shape[1]
    assert d_in == obs_dim + eps_dim and d_out == act_dim

    h1p = _round_up(h1, LANE)
    h2p = _round_up(h2, LANE)
    ap8 = _round_up(d_out, 8)

    w1p = jnp.pad(w1, ((0, 0), (0, h1p - h1)))
    w1o = w1p[:obs_dim].astype(jnp.bfloat16)
    w1e = w1p[obs_dim:].astype(jnp.bfloat16)
    b1p = jnp.pad(b1, (0, h1p - h1)).reshape(1, h1p).astype(jnp.float32)
    w2p = jnp.pad(w2, ((0, h1p - h1), (0, h2p - h2))).astype(jnp.bfloat16)
    b2p = jnp.pad(b2, (0, h2p - h2)).reshape(1, h2p).astype(jnp.float32)
    # Last layer stored transposed: (act_pad8, h2p); bias as (act_pad8, 1).
    w3t = jnp.pad(w3, ((0, h2p - h2), (0, ap8 - d_out))).T.astype(jnp.bfloat16)
    b3t = jnp.pad(b3, (0, ap8 - d_out)).reshape(ap8, 1).astype(jnp.float32)
    return (w1o, w1e, b1p, w2p, b2p, w3t, b3t)


# --------------------------------------------------------------------------------------
# Top-level forward (matches GenerativeGaussianMLPActor.forward)
# --------------------------------------------------------------------------------------
@functools.partial(jax.jit, static_argnames=("act_dim", "noise", "block_b"))
def generative_gaussian_mlp_actor(obs, rng_key, prepared_params, act_dim,
                                  std=1.0, noise="gaussian", epsilon_limit=5.0,
                                  block_b=None):
    """std / epsilon_limit are traced scalars: annealing them does NOT recompile."""
    eps_dim = act_dim * act_dim
    B = obs.shape[0]
    # TODO(synk): epsilon could be drawn in-kernel (pltpu.prng_seed + stateful_normal)
    # to remove this small HBM round-trip, but those primitives have no interpret/CPU
    # lowering; the portable path draws it here and ships it as the bf16 MXU operand
    # the kernel needs anyway.
    if noise == "gaussian":
        eps = jnp.clip(std * jax.random.normal(rng_key, (B, eps_dim), jnp.float32),
                       -epsilon_limit, epsilon_limit)
    else:  # 'uniform': matches the reference (uniform in [-1,1]; std/limit unused).
        eps = jax.random.uniform(rng_key, (B, eps_dim), jnp.float32) * 2.0 - 1.0
    eps = eps.astype(jnp.bfloat16)

    out_t = actor_forward_pallas(obs, eps, prepared_params, block_b=block_b)
    # Single fused slice + transpose of a tiny (act_dim, B) array.
    return out_t[:act_dim, :].T


def reference_forward(obs, eps, raw_params):
    """Pure-JAX f32 reference of the original module for a given epsilon."""
    w1, b1, w2, b2, w3, b3 = raw_params
    x = jnp.concatenate([obs, eps], axis=-1)
    h = jnp.maximum(x @ w1 + b1, 0.0)
    h = jnp.maximum(h @ w2 + b2, 0.0)
    return jnp.tanh(h @ w3 + b3)


if __name__ == "__main__":
    # Small shapes consistent with the module.
    obs_dim = 12
    act_dim = 4               # -> epsilon_dim = 16
    hidden_sizes = [32, 32]   # becomes [48, 32] after hidden_sizes[0] += epsilon_dim
    batch = 50                # not a multiple of 8/128: exercises the small-B path

    root = jax.random.PRNGKey(0)
    k_params, k_obs, k_eps = jax.random.split(root, 3)

    raw_params, epsilon_dim = init_actor_params(k_params, obs_dim, act_dim, hidden_sizes)
    params = prepare_params(raw_params, obs_dim, act_dim)
    obs = jax.random.normal(k_obs, (batch, obs_dim), dtype=jnp.float32)

    # Deterministic check: std=0 -> epsilon == 0 -> compare against the pure-JAX MLP
    # (only differences are bf16 weight rounding and accumulation order).
    out_det = generative_gaussian_mlp_actor(obs, k_eps, params, act_dim, std=0.0)
    out_det = jax.block_until_ready(out_det)
    ref_det = reference_forward(obs, jnp.zeros((batch, epsilon_dim), jnp.float32),
                                raw_params)
    assert out_det.shape == (batch, act_dim)
    assert bool(jnp.allclose(out_det, ref_det, atol=1e-6, rtol=0.05))

    # Stochastic forward; std is a traced scalar -> the second call reuses the compile.
    for s in (1.0, 0.5):
        pi_action = generative_gaussian_mlp_actor(obs, k_eps, params, act_dim, std=s)
        pi_action = jax.block_until_ready(pi_action)
        assert pi_action.shape == (batch, act_dim)
        assert bool(jnp.all(jnp.abs(pi_action) <= 1.0))   # tanh output range
        assert bool(jnp.all(jnp.isfinite(pi_action)))

    # Uniform-noise branch (reference semantics: uniform in [-1, 1], std ignored).
    pi_u = generative_gaussian_mlp_actor(obs, k_eps, params, act_dim, noise="uniform")
    pi_u = jax.block_until_ready(pi_u)
    assert pi_u.shape == (batch, act_dim)
    assert bool(jnp.all(jnp.isfinite(pi_u)))

    print("KERNEL_OK")
</pallas_src>

<mosaic_0001>
module attributes {stable_mosaic.version = 11 : i64} {
  func.func @_actor_kernel(%arg0: i32, %arg1: memref<50x12xf32, #tpu.memory_space<vmem>>, %arg2: memref<50x16xbf16, #tpu.memory_space<vmem>>, %arg3: memref<12x128xbf16, #tpu.memory_space<vmem>>, %arg4: memref<16x128xbf16, #tpu.memory_space<vmem>>, %arg5: memref<1x128xf32, #tpu.memory_space<vmem>>, %arg6: memref<128x128xbf16, #tpu.memory_space<vmem>>, %arg7: memref<1x128xf32, #tpu.memory_space<vmem>>, %arg8: memref<8x128xbf16, #tpu.memory_space<vmem>>, %arg9: memref<8x1xf32, #tpu.memory_space<vmem>>, %arg10: memref<8x50xf32, #tpu.memory_space<vmem>>) attributes {dimension_semantics = [#tpu.dimension_semantics<parallel>], iteration_bounds = array<i64: 1>, scalar_prefetch = 0 : i64, scratch_operands = 0 : i64, tpu.core_type = #tpu.core_type<tc>, window_params = [{transform_indices = @transform_0, window_bounds = array<i64: 50, 12>}, {transform_indices = @transform_1, window_bounds = array<i64: 50, 16>}, {pipeline_mode = #tpu.pipeline_mode<synchronous>, transform_indices = @transform_2, window_bounds = array<i64: 12, 128>}, {pipeline_mode = #tpu.pipeline_mode<synchronous>, transform_indices = @transform_3, window_bounds = array<i64: 16, 128>}, {pipeline_mode = #tpu.pipeline_mode<synchronous>, transform_indices = @transform_4, window_bounds = array<i64: 1, 128>}, {pipeline_mode = #tpu.pipeline_mode<synchronous>, transform_indices = @transform_5, window_bounds = array<i64: 128, 128>}, {pipeline_mode = #tpu.pipeline_mode<synchronous>, transform_indices = @transform_6, window_bounds = array<i64: 1, 128>}, {pipeline_mode = #tpu.pipeline_mode<synchronous>, transform_indices = @transform_7, window_bounds = array<i64: 8, 128>}, {pipeline_mode = #tpu.pipeline_mode<synchronous>, transform_indices = @transform_8, window_bounds = array<i64: 8, 1>}, {transform_indices = @transform_9, window_bounds = array<i64: 8, 50>}]} {
    %c0 = arith.constant 0 : index
    %c0_0 = arith.constant 0 : index
    %0 = vector.load %arg1[%c0, %c0_0] : memref<50x12xf32, #tpu.memory_space<vmem>>, vector<50x12xf32>
    %1 = arith.truncf %0 : vector<50x12xf32> to vector<50x12xbf16>
    %c0_1 = arith.constant 0 : index
    %c0_2 = arith.constant 0 : index
    %2 = vector.load %arg3[%c0_1, %c0_2] : memref<12x128xbf16, #tpu.memory_space<vmem>>, vector<12x128xbf16>
    %cst = arith.constant dense<0.000000e+00> : vector<50x128xf32>
    %3 = tpu.matmul %1, %2, %cst {dimension_numbers = #tpu.dot_dimension_numbers<[1], [0], [0], [1], [0, 0, 1, 1], [], []>} : vector<50x12xbf16>, vector<12x128xbf16>, vector<50x128xf32> -> vector<50x128xf32>
    %c0_3 = arith.constant 0 : index
    %c0_4 = arith.constant 0 : index
    %4 = vector.load %arg2[%c0_3, %c0_4] : memref<50x16xbf16, #tpu.memory_space<vmem>>, vector<50x16xbf16>
    %c0_5 = arith.constant 0 : index
    %c0_6 = arith.constant 0 : index
    %5 = vector.load %arg4[%c0_5, %c0_6] : memref<16x128xbf16, #tpu.memory_space<vmem>>, vector<16x128xbf16>
    %cst_7 = arith.constant dense<0.000000e+00> : vector<50x128xf32>
    %6 = tpu.matmul %4, %5, %cst_7 {dimension_numbers = #tpu.dot_dimension_numbers<[1], [0], [0], [1], [0, 0, 1, 1], [], []>} : vector<50x16xbf16>, vector<16x128xbf16>, vector<50x128xf32> -> vector<50x128xf32>
    %7 = arith.addf %3, %6 : vector<50x128xf32>
    %c0_8 = arith.constant 0 : index
    %c0_9 = arith.constant 0 : index
    %8 = vector.load %arg5[%c0_8, %c0_9] : memref<1x128xf32, #tpu.memory_space<vmem>>, vector<1x128xf32>
    %9 = vector.broadcast %8 : vector<1x128xf32> to vector<50x128xf32>
    %10 = arith.addf %7, %9 : vector<50x128xf32>
    %cst_10 = arith.constant 0.000000e+00 : f32
    %11 = vector.broadcast %cst_10 : f32 to vector<50x128xf32>
    %12 = arith.maximumf %10, %11 : vector<50x128xf32>
    %13 = arith.truncf %12 : vector<50x128xf32> to vector<50x128xbf16>
    %c0_11 = arith.constant 0 : index
    %c0_12 = arith.constant 0 : index
    %14 = vector.load %arg6[%c0_11, %c0_12] : memref<128x128xbf16, #tpu.memory_space<vmem>>, vector<128x128xbf16>
    %cst_13 = arith.constant dense<0.000000e+00> : vector<50x128xf32>
    %15 = tpu.matmul %13, %14, %cst_13 {dimension_numbers = #tpu.dot_dimension_numbers<[1], [0], [0], [1], [0, 0, 1, 1], [], []>} : vector<50x128xbf16>, vector<128x128xbf16>, vector<50x128xf32> -> vector<50x128xf32>
    %c0_14 = arith.constant 0 : index
    %c0_15 = arith.constant 0 : index
    %16 = vector.load %arg7[%c0_14, %c0_15] : memref<1x128xf32, #tpu.memory_space<vmem>>, vector<1x128xf32>
    %17 = vector.broadcast %16 : vector<1x128xf32> to vector<50x128xf32>
    %18 = arith.addf %15, %17 : vector<50x128xf32>
    %cst_16 = arith.constant 0.000000e+00 : f32
    %19 = vector.broadcast %cst_16 : f32 to vector<50x128xf32>
    %20 = arith.maximumf %18, %19 : vector<50x128xf32>
    %c0_17 = arith.constant 0 : index
    %c0_18 = arith.constant 0 : index
    %21 = vector.load %arg8[%c0_17, %c0_18] : memref<8x128xbf16, #tpu.memory_space<vmem>>, vector<8x128xbf16>
    %22 = arith.truncf %20 : vector<50x128xf32> to vector<50x128xbf16>
    %cst_19 = arith.constant dense<0.000000e+00> : vector<8x50xf32>
    %23 = tpu.matmul %21, %22, %cst_19 {dimension_numbers = #tpu.dot_dimension_numbers<[1], [1], [0], [0], [0, 0, 1, 0], [], []>} : vector<8x128xbf16>, vector<50x128xbf16>, vector<8x50xf32> -> vector<8x50xf32>
    %c0_20 = arith.constant 0 : index
    %c0_21 = arith.constant 0 : index
    %24 = vector.load %arg9[%c0_20, %c0_21] : memref<8x1xf32, #tpu.memory_space<vmem>>, vector<8x1xf32>
    %25 = vector.broadcast %24 : vector<8x1xf32> to vector<8x50xf32>
    %26 = arith.addf %23, %25 : vector<8x50xf32>
    %27 = math.tanh %26 : vector<8x50xf32>
    %c0_22 = arith.constant 0 : index
    %c0_23 = arith.constant 0 : index
    %28 = vector.load %arg10[%c0_22, %c0_23] : memref<8x50xf32, #tpu.memory_space<vmem>>, vector<8x50xf32>
    tpu.vector_store %arg10[%c0_22, %c0_23], %27 {strides = array<i32>} : memref<8x50xf32, #tpu.memory_space<vmem>>, vector<8x50xf32>,
    return
  }
  func.func @transform_0(%arg0: i32) -> (i32, i32) {
    %c0_i32 = arith.constant 0 : i32
    %c0_i32_0 = arith.constant 0 : i32
    return %arg0, %c0_i32 : i32, i32
  }
  func.func @transform_1(%arg0: i32) -> (i32, i32) {
    %c0_i32 = arith.constant 0 : i32
    %c0_i32_0 = arith.constant 0 : i32
    return %arg0, %c0_i32 : i32, i32
  }
  func.func @transform_2(%arg0: i32) -> (i32, i32) {
    %c0_i32 = arith.constant 0 : i32
    %c0_i32_0 = arith.constant 0 : i32
    %c0_i32_1 = arith.constant 0 : i32
    return %c0_i32, %c0_i32_0 : i32, i32
  }
  func.func @transform_3(%arg0: i32) -> (i32, i32) {
    %c0_i32 = arith.constant 0 : i32
    %c0_i32_0 = arith.constant 0 : i32
    %c0_i32_1 = arith.constant 0 : i32
    return %c0_i32, %c0_i32_0 : i32, i32
  }
  func.func @transform_4(%arg0: i32) -> (i32, i32) {
    %c0_i32 = arith.constant 0 : i32
    %c0_i32_0 = arith.constant 0 : i32
    %c0_i32_1 = arith.constant 0 : i32
    return %c0_i32, %c0_i32_0 : i32, i32
  }
  func.func @transform_5(%arg0: i32) -> (i32, i32) {
    %c0_i32 = arith.constant 0 : i32
    %c0_i32_0 = arith.constant 0 : i32
    %c0_i32_1 = arith.constant 0 : i32
    return %c0_i32, %c0_i32_0 : i32, i32
  }
  func.func @transform_6(%arg0: i32) -> (i32, i32) {
    %c0_i32 = arith.constant 0 : i32
    %c0_i32_0 = arith.constant 0 : i32
    %c0_i32_1 = arith.constant 0 : i32
    return %c0_i32, %c0_i32_0 : i32, i32
  }
  func.func @transform_7(%arg0: i32) -> (i32, i32) {
    %c0_i32 = arith.constant 0 : i32
    %c0_i32_0 = arith.constant 0 : i32
    %c0_i32_1 = arith.constant 0 : i32
    return %c0_i32, %c0_i32_0 : i32, i32
  }
  func.func @transform_8(%arg0: i32) -> (i32, i32) {
    %c0_i32 = arith.constant 0 : i32
    %c0_i32_0 = arith.constant 0 : i32
    %c0_i32_1 = arith.constant 0 : i32
    return %c0_i32, %c0_i32_0 : i32, i32
  }
  func.func @transform_9(%arg0: i32) -> (i32, i32) {
    %c0_i32 = arith.constant 0 : i32
    %c0_i32_0 = arith.constant 0 : i32
    return %c0_i32, %arg0 : i32, i32
  }
}

</mosaic_0001>

<llo_original>
// kernel: generative_gaussian_mlp_actor.1
$region0: #{generative_gaussian_mlp_actor.1}
  #allocation0 [shape = 'u32[]', space=smem, size = 0x4, offset = 0x4, fixed_abs, tag = 'smem constant byte address 0x4 - core index']
  #allocation1 [shape = 'u32[144,128]{1,0:T(1,128)}', space=vmem, size = 0x12000, scoped, tag = 'internal scratch']
  %s0 = inlined_call_operand.vmem [shape: f32[50,12], index: 0, kind: input, shape index: {}]
  %s1 = inlined_call_operand.vmem [shape: bf16[50,16], index: 1, kind: input, shape index: {}]
  %s2 = inlined_call_operand.vmem [shape: bf16[12,128], index: 2, kind: input, shape index: {}]
  %s3 = inlined_call_operand.vmem [shape: bf16[16,128], index: 3, kind: input, shape index: {}]
  %s4 = inlined_call_operand.vmem [shape: f32[1,128], index: 4, kind: input, shape index: {}]
  %s5 = inlined_call_operand.vmem [shape: bf16[128,128], index: 5, kind: input, shape index: {}]
  %s6 = inlined_call_operand.vmem [shape: f32[1,128], index: 6, kind: input, shape index: {}]
  %s7 = inlined_call_operand.vmem [shape: bf16[8,128], index: 7, kind: input, shape index: {}]
  %s8 = inlined_call_operand.vmem [shape: f32[8,1], index: 8, kind: input, shape index: {}]
  %s9 = inlined_call_operand.vmem [shape: f32[8,50], index: 9, kind: output, shape index: {}]
  %s10 = sld [smem:[#allocation0]]
  $region46: #{generative_gaussian_mlp_actor.1} parent=0
    _
  %s12 = ssub.s32 1, %s10
  %s13 = scalar_select 0, %s12, %s10
  // Predicated region
  $region2: #{generative_gaussian_mlp_actor.1} parent=0 // pred_check
    _
  $region3: #{generative_gaussian_mlp_actor.1} parent=0 // pred_check_branch
    %15 = sbr.rel (0) target = $region5
  $region4: #{generative_gaussian_mlp_actor.1} parent=0 // pred_region
    _
  $region5: #{generative_gaussian_mlp_actor.1} parent=0 // pred_fallthru
    _
  // Predicated region
  $region6: #{generative_gaussian_mlp_actor.1} parent=0 // pred_check
    _
  $region7: #{generative_gaussian_mlp_actor.1} parent=0 // pred_check_branch
    %17 = sbr.rel (0) target = $region9
  $region8: #{generative_gaussian_mlp_actor.1} parent=0 // pred_region
    _
  $region9: #{generative_gaussian_mlp_actor.1} parent=0 // pred_fallthru
    _
  // Predicated region
  $region10: #{generative_gaussian_mlp_actor.1} parent=0 // pred_check
    _
  $region11: #{generative_gaussian_mlp_actor.1} parent=0 // pred_check_branch
    %19 = sbr.rel (0) target = $region13
  $region12: #{generative_gaussian_mlp_actor.1} parent=0 // pred_region
    _
  $region13: #{generative_gaussian_mlp_actor.1} parent=0 // pred_fallthru
    _
  // Predicated region
  $region14: #{generative_gaussian_mlp_actor.1} parent=0 // pred_check
    _
  $region15: #{generative_gaussian_mlp_actor.1} parent=0 // pred_check_branch
    %21 = sbr.rel (0) target = $region17
  $region16: #{generative_gaussian_mlp_actor.1} parent=0 // pred_region
    _
  $region17: #{generative_gaussian_mlp_actor.1} parent=0 // pred_fallthru
    _
  // Predicated region
  $region18: #{generative_gaussian_mlp_actor.1} parent=0 // pred_check
    _
  $region19: #{generative_gaussian_mlp_actor.1} parent=0 // pred_check_branch
    %23 = sbr.rel (0) target = $region21
  $region20: #{generative_gaussian_mlp_actor.1} parent=0 // pred_region
    _
  $region21: #{generative_gaussian_mlp_actor.1} parent=0 // pred_fallthru
    _
  // Predicated region
  $region22: #{generative_gaussian_mlp_actor.1} parent=0 // pred_check
    _
  $region23: #{generative_gaussian_mlp_actor.1} parent=0 // pred_check_branch
    %25 = sbr.rel (0) target = $region25
  $region24: #{generative_gaussian_mlp_actor.1} parent=0 // pred_region
    _
  $region25: #{generative_gaussian_mlp_actor.1} parent=0 // pred_fallthru
    _
  // Predicated region
  $region26: #{generative_gaussian_mlp_actor.1} parent=0 // pred_check
    _
  $region27: #{generative_gaussian_mlp_actor.1} parent=0 // pred_check_branch
    %27 = sbr.rel (0) target = $region29
  $region28: #{generative_gaussian_mlp_actor.1} parent=0 // pred_region
    _
  $region29: #{generative_gaussian_mlp_actor.1} parent=0 // pred_fallthru
    _
  // Predicated region
  $region30: #{generative_gaussian_mlp_actor.1} parent=0 // pred_check
    _
  $region31: #{generative_gaussian_mlp_actor.1} parent=0 // pred_check_branch
    %29 = sbr.rel (0) target = $region33
  $region32: #{generative_gaussian_mlp_actor.1} parent=0 // pred_region
    _
  $region33: #{generative_gaussian_mlp_actor.1} parent=0 // pred_fallthru
    _
  // Predicated region
  $region34: #{generative_gaussian_mlp_actor.1} parent=0 // pred_check
    _
  $region35: #{generative_gaussian_mlp_actor.1} parent=0 // pred_check_branch
    %31 = sbr.rel (0) target = $region37
  $region36: #{generative_gaussian_mlp_actor.1} parent=0 // pred_region
    _
  $region37: #{generative_gaussian_mlp_actor.1} parent=0 // pred_fallthru
    _
  %v33 = vld [vmem:[%s0] sm:$0xff]
  %v34 = vld [vmem:[%s0 + $0x8] sm:$0xff]
  %v35 = vld [vmem:[%s0 + $0x10] sm:$0xff]
  %v36 = vld [vmem:[%s0 + $0x18] sm:$0xff]
  %v37 = vld [vmem:[%s0 + $0x20] sm:$0xff]
  %v38 = vld [vmem:[%s0 + $0x28] sm:$0xff]
  %v39 = vld [vmem:[%s0 + $0x30] sm:$0x3]
  %v40 = vpack.c.bf16 %v34, %v33
  %v41 = vpack.c.bf16 %v36, %v35
  %v42 = vpack.c.bf16 %v38, %v37
  %v43 = vpack.c.bf16 %v39, %v39
  %v44 = vld [vmem:[%s2] sm:$0xf]
  %v45 = vld [vmem:[%s2 + $0x4] sm:$0x3]
  %v46 = vld [vmem:[%s1] sm:$0xf]
  %v47 = vld [vmem:[%s1 + $0x4] sm:$0xf]
  %v48 = vld [vmem:[%s1 + $0x8] sm:$0xf]
  %v49 = vld [vmem:[%s1 + $0xc] sm:$0xf]
  %v50 = vld [vmem:[%s1 + $0x10] sm:$0xf]
  %v51 = vld [vmem:[%s1 + $0x14] sm:$0xf]
  %v52 = vld [vmem:[%s1 + $0x18] sm:$0x1]
  %v53 = vld [vmem:[%s3] sm:$0xf]
  %v54 = vld [vmem:[%s3 + $0x4] sm:$0xf]
  %v62 = vunpack.c.l.b16 %v46
  %v63 = vunpack.c.l.b16 %v47
  %v64 = vunpack.c.l.b16 %v48
  %v65 = vunpack.c.l.b16 %v49
  %v66 = vunpack.c.l.b16 %v50
  %v67 = vunpack.c.l.b16 %v51
  %v68 = vunpack.c.l.b16 %v52
  %v69 = vpack.c.b16 %v63, %v62
  %v70 = vpack.c.b16 %v65, %v64
  %v71 = vpack.c.b16 %v67, %v66
  %v72 = vpack.c.b16 %v68, %v68
  %v75 = vunpack.c.l.b16 %v53
  %v76 = vunpack.c.l.b16 %v54
  %v77 = vpack.c.b16 %v76, %v75
  %vm79 = vcmask 130048
  %v81 = vsel %vm79, %v69, 0
  %v84 = vsel %vm79, %v70, 0
  %v87 = vsel %vm79, %v71, 0
  %v90 = vsel %vm79, %v72, 0
  %92 = vmatprep.subr.bf16.mxu0 0
  %93 = vmatpush1.bf16.msra.mxu0 0
  %94 = vmatprep.subr.bf16.mxu0 0
  %95 = vmatpush1.bf16.msra.mxu0 0
  %96 = vmatprep.subr.bf16.mxu0 0
  %97 = vmatpush1.bf16.msra.mxu0 0
  %98 = vmatprep.subr.bf16.mxu0 0
  %99 = vmatpush1.bf16.msra.mxu0 0
  %100 = vmatprep.subr.bf16.mxu0 0
  %101 = vmatpush1.bf16.msra.mxu0 0
  %102 = vmatprep.subr.bf16.mxu0 0
  %103 = vmatpush1.bf16.msra.mxu0 0
  %104 = vmatprep.subr.bf16.mxu0 0
  %105 = vmatpush1.bf16.msra.mxu0 0
  %106 = vmatprep.subr.bf16.mxu0 0
  %107 = vmatpush1.bf16.msra.mxu0 %v77
  %108 = vmatprep.subr.bf16.mxu0 0
  %109 = vmatpush2.bf16.msra.mxu0 0
  %110 = vmatprep.subr.bf16.mxu0 0
  %111 = vmatpush2.bf16.msra.mxu0 0
  %112 = vmatprep.subr.bf16.mxu0 0
  %113 = vmatpush2.bf16.msra.mxu0 0
  %114 = vmatprep.subr.bf16.mxu0 0
  %115 = vmatpush2.bf16.msra.mxu0 0
  %116 = vmatprep.subr.bf16.mxu0 0
  %117 = vmatpush2.bf16.msra.mxu0 0
  %118 = vmatprep.subr.bf16.mxu0 0
  %119 = vmatpush2.bf16.msra.mxu0 0
  %120 = vmatprep.subr.bf16.mxu0 0
  %121 = vmatpush2.bf16.msra.mxu0 0
  %122 = vmatprep.subr.bf16.mxu0 0
  %123 = vmatpush2.bf16.msra.mxu0 0
  %124 = vmatprep.mubr.bf16.mxu0 0
  %125 = vmatmul.mubr.bf16.gmra.mxu0 %v81
  %v126 = vpop.f32.mrf.mxu0
  %v127 = vadd.f32 0.0, %v126
  %v128 = vpop.f32.mrf.mxu0
  %v129 = vpop.f32.mrf.mxu0
  %v130 = vadd.f32 0.0, %v129
  %v131 = vpop.f32.mrf.mxu0
  %132 = vmatprep.mubr.bf16.mxu0 0
  %133 = vmatmul.mubr.bf16.gmra.mxu0 %v84
  %v134 = vpop.f32.mrf.mxu0
  %v135 = vadd.f32 0.0, %v134
  %v136 = vpop.f32.mrf.mxu0
  %v137 = vpop.f32.mrf.mxu0
  %v138 = vadd.f32 0.0, %v137
  %v139 = vpop.f32.mrf.mxu0
  %140 = vmatprep.mubr.bf16.mxu0 0
  %141 = vmatmul.mubr.bf16.gmra.mxu0 %v87
  %v142 = vpop.f32.mrf.mxu0
  %v143 = vadd.f32 0.0, %v142
  %v144 = vpop.f32.mrf.mxu0
  %v145 = vpop.f32.mrf.mxu0
  %v146 = vadd.f32 0.0, %v145
  %v147 = vpop.f32.mrf.mxu0
  %148 = vmatprep.mubr.bf16.mxu0 0
  %149 = vmatmul.mubr.bf16.gmra.mxu0 %v90
  %v150 = vpop.f32.mrf.mxu0
  %v151 = vadd.f32 0.0, %v150
  %v152 = vpop.f32.mrf.mxu0
  %v153 = vpop.f32.mrf.mxu0
  %v154 = vpop.f32.mrf.mxu0
  %155 = vdwg.mxu0
  %v158 = vunpack.c.l.b16 %v44
  %v159 = vunpack.c.l.b16 %v45
  %v160 = vpack.c.b16 %v159, %v158
  %vm161 = vcmask 97280
  %v163 = vsel %vm161, %v40, 0
  %v166 = vsel %vm161, %v41, 0
  %v169 = vsel %vm161, %v42, 0
  %v172 = vsel %vm161, %v43, 0
  %vm174 = vcmask 1045504
  %v176 = vsel %vm174, %v160, 0
  %178 = vmatprep.subr.bf16.mxu0 0
  %179 = vmatpush1.bf16.msra.mxu0 0
  %180 = vmatprep.subr.bf16.mxu0 0
  %181 = vmatpush1.bf16.msra.mxu0 0
  %182 = vmatprep.subr.bf16.mxu0 0
  %183 = vmatpush1.bf16.msra.mxu0 0
  %184 = vmatprep.subr.bf16.mxu0 0
  %185 = vmatpush1.bf16.msra.mxu0 0
  %186 = vmatprep.subr.bf16.mxu0 0
  %187 = vmatpush1.bf16.msra.mxu0 0
  %188 = vmatprep.subr.bf16.mxu0 0
  %189 = vmatpush1.bf16.msra.mxu0 0
  %190 = vmatprep.subr.bf16.mxu0 0
  %191 = vmatpush1.bf16.msra.mxu0 0
  %192 = vmatprep.subr.bf16.mxu0 0
  %193 = vmatpush1.bf16.msra.mxu0 %v176
  %194 = vmatprep.subr.bf16.mxu0 0
  %195 = vmatpush2.bf16.msra.mxu0 0
  %196 = vmatprep.subr.bf16.mxu0 0
  %197 = vmatpush2.bf16.msra.mxu0 0
  %198 = vmatprep.subr.bf16.mxu0 0
  %199 = vmatpush2.bf16.msra.mxu0 0
  %200 = vmatprep.subr.bf16.mxu0 0
  %201 = vmatpush2.bf16.msra.mxu0 0
  %202 = vmatprep.subr.bf16.mxu0 0
  %203 = vmatpush2.bf16.msra.mxu0 0
  %204 = vmatprep.subr.bf16.mxu0 0
  %205 = vmatpush2.bf16.msra.mxu0 0
  %206 = vmatprep.subr.bf16.mxu0 0
  %207 = vmatpush2.bf16.msra.mxu0 0
  %208 = vmatprep.subr.bf16.mxu0 0
  %209 = vmatpush2.bf16.msra.mxu0 0
  %210 = vmatprep.mubr.bf16.mxu0 0
  %211 = vmatmul.mubr.bf16.gmra.mxu0 %v163
  %v212 = vpop.f32.mrf.mxu0
  %v213 = vadd.f32 %v127, %v212
  %v214 = vpop.f32.mrf.mxu0
  %v215 = vpop.f32.mrf.mxu0
  %v216 = vadd.f32 %v130, %v215
  %v217 = vpop.f32.mrf.mxu0
  %218 = vmatprep.mubr.bf16.mxu0 0
  %219 = vmatmul.mubr.bf16.gmra.mxu0 %v166
  %v220 = vpop.f32.mrf.mxu0
  %v221 = vadd.f32 %v135, %v220
  %v222 = vpop.f32.mrf.mxu0
  %v223 = vpop.f32.mrf.mxu0
  %v224 = vadd.f32 %v138, %v223
  %v225 = vpop.f32.mrf.mxu0
  %226 = vmatprep.mubr.bf16.mxu0 0
  %227 = vmatmul.mubr.bf16.gmra.mxu0 %v169
  %v228 = vpop.f32.mrf.mxu0
  %v229 = vadd.f32 %v143, %v228
  %v230 = vpop.f32.mrf.mxu0
  %v231 = vpop.f32.mrf.mxu0
  %v232 = vadd.f32 %v146, %v231
  %v233 = vpop.f32.mrf.mxu0
  %234 = vmatprep.mubr.bf16.mxu0 0
  %235 = vmatmul.mubr.bf16.gmra.mxu0 %v172
  %v236 = vpop.f32.mrf.mxu0
  %v237 = vadd.f32 %v151, %v236
  %v238 = vpop.f32.mrf.mxu0
  %v239 = vpop.f32.mrf.mxu0
  %v240 = vpop.f32.mrf.mxu0
  %241 = vdwg.mxu0
  %v242 = vld [vmem:[%s4] sm:$0x1]
  %v244 = vlaneseq
  %v245 = vshrl.u32 %v244, 7
  %v246 = vsub.s32 0, %v245
  %v247 = vrot.slane %v242, %v246
  %v249 = vadd.f32 %v213, %v247
  %v250 = vadd.f32 %v216, %v247
  %v251 = vadd.f32 %v221, %v247
  %v252 = vadd.f32 %v224, %v247
  %v253 = vadd.f32 %v229, %v247
  %v254 = vadd.f32 %v232, %v247
  %v255 = vadd.f32 %v237, %v247
  %v256 = vmax.f32 %v249, 0.0
  %v257 = vmax.f32 %v250, 0.0
  %v258 = vmax.f32 %v251, 0.0
  %v259 = vmax.f32 %v252, 0.0
  %v260 = vmax.f32 %v253, 0.0
  %v261 = vmax.f32 %v254, 0.0
  %v262 = vmax.f32 %v255, 0.0
  %v263 = vpack.c.bf16 %v257, %v256
  %v264 = vpack.c.bf16 %v259, %v258
  %v265 = vpack.c.bf16 %v261, %v260
  %v266 = vpack.c.bf16 %v262, %v262
  %v267 = vld [vmem:[%s5] sm:$0xf]
  %v268 = vld [vmem:[%s5 + $0x4] sm:$0xf]
  %v269 = vld [vmem:[%s5 + $0x8] sm:$0xf]
  %v270 = vld [vmem:[%s5 + $0xc] sm:$0xf]
  %v271 = vld [vmem:[%s5 + $0x10] sm:$0xf]
  %v272 = vld [vmem:[%s5 + $0x14] sm:$0xf]
  %v273 = vld [vmem:[%s5 + $0x18] sm:$0xf]
  %v274 = vld [vmem:[%s5 + $0x1c] sm:$0xf]
  %v275 = vld [vmem:[%s5 + $0x20] sm:$0xf]
  %v276 = vld [vmem:[%s5 + $0x24] sm:$0xf]
  %v277 = vld [vmem:[%s5 + $0x28] sm:$0xf]
  %v278 = vld [vmem:[%s5 + $0x2c] sm:$0xf]
  %v279 = vld [vmem:[%s5 + $0x30] sm:$0xf]
  %v280 = vld [vmem:[%s5 + $0x34] sm:$0xf]
  %v281 = vld [vmem:[%s5 + $0x38] sm:$0xf]
  %v282 = vld [vmem:[%s5 + $0x3c] sm:$0xf]
  %v283 = vld [vmem:[%s6] sm:$0x1]
  %v285 = vlaneseq
  %v286 = vshrl.u32 %v285, 7
  %v287 = vsub.s32 0, %v286
  %v288 = vrot.slane %v283, %v287
  %v306 = vunpack.c.l.b16 %v267
  %v307 = vunpack.c.l.b16 %v268
  %v308 = vunpack.c.l.b16 %v269
  %v309 = vunpack.c.l.b16 %v270
  %v310 = vunpack.c.l.b16 %v271
  %v311 = vunpack.c.l.b16 %v272
  %v312 = vunpack.c.l.b16 %v273
  %v313 = vunpack.c.l.b16 %v274
  %v314 = vunpack.c.l.b16 %v275
  %v315 = vunpack.c.l.b16 %v276
  %v316 = vunpack.c.l.b16 %v277
  %v317 = vunpack.c.l.b16 %v278
  %v318 = vunpack.c.l.b16 %v279
  %v319 = vunpack.c.l.b16 %v280
  %v320 = vunpack.c.l.b16 %v281
  %v321 = vunpack.c.l.b16 %v282
  %v322 = vpack.c.b16 %v307, %v306
  %v323 = vpack.c.b16 %v309, %v308
  %v324 = vpack.c.b16 %v311, %v310
  %v325 = vpack.c.b16 %v313, %v312
  %v326 = vpack.c.b16 %v315, %v314
  %v327 = vpack.c.b16 %v317, %v316
  %v328 = vpack.c.b16 %v319, %v318
  %v329 = vpack.c.b16 %v321, %v320
  %338 = vmatprep.subr.bf16.mxu0 0
  %339 = vmatpush1.bf16.msra.mxu0 %v329
  %340 = vmatprep.subr.bf16.mxu0 0
  %341 = vmatpush1.bf16.msra.mxu0 %v328
  %342 = vmatprep.subr.bf16.mxu0 0
  %343 = vmatpush1.bf16.msra.mxu0 %v327
  %344 = vmatprep.subr.bf16.mxu0 0
  %345 = vmatpush1.bf16.msra.mxu0 %v326
  %346 = vmatprep.subr.bf16.mxu0 0
  %347 = vmatpush1.bf16.msra.mxu0 %v325
  %348 = vmatprep.subr.bf16.mxu0 0
  %349 = vmatpush1.bf16.msra.mxu0 %v324
  %350 = vmatprep.subr.bf16.mxu0 0
  %351 = vmatpush1.bf16.msra.mxu0 %v323
  %352 = vmatprep.subr.bf16.mxu0 0
  %353 = vmatpush1.bf16.msra.mxu0 %v322
  %354 = vmatprep.subr.bf16.mxu0 0
  %355 = vmatpush2.bf16.msra.mxu0 0
  %356 = vmatprep.subr.bf16.mxu0 0
  %357 = vmatpush2.bf16.msra.mxu0 0
  %358 = vmatprep.subr.bf16.mxu0 0
  %359 = vmatpush2.bf16.msra.mxu0 0
  %360 = vmatprep.subr.bf16.mxu0 0
  %361 = vmatpush2.bf16.msra.mxu0 0
  %362 = vmatprep.subr.bf16.mxu0 0
  %363 = vmatpush2.bf16.msra.mxu0 0
  %364 = vmatprep.subr.bf16.mxu0 0
  %365 = vmatpush2.bf16.msra.mxu0 0
  %366 = vmatprep.subr.bf16.mxu0 0
  %367 = vmatpush2.bf16.msra.mxu0 0
  %368 = vmatprep.subr.bf16.mxu0 0
  %369 = vmatpush2.bf16.msra.mxu0 0
  %370 = vmatprep.mubr.bf16.mxu0 0
  %371 = vmatmul.mubr.bf16.gmra.mxu0 %v263
  %v372 = vpop.f32.mrf.mxu0
  %v373 = vadd.f32 %v288, %v372
  %v374 = vpop.f32.mrf.mxu0
  %v375 = vpop.f32.mrf.mxu0
  %v376 = vadd.f32 %v288, %v375
  %v377 = vpop.f32.mrf.mxu0
  %378 = vmatprep.mubr.bf16.mxu0 0
  %379 = vmatmul.mubr.bf16.gmra.mxu0 %v264
  %v380 = vpop.f32.mrf.mxu0
  %v381 = vadd.f32 %v288, %v380
  %v382 = vpop.f32.mrf.mxu0
  %v383 = vpop.f32.mrf.mxu0
  %v384 = vadd.f32 %v288, %v383
  %v385 = vpop.f32.mrf.mxu0
  %386 = vmatprep.mubr.bf16.mxu0 0
  %387 = vmatmul.mubr.bf16.gmra.mxu0 %v265
  %v388 = vpop.f32.mrf.mxu0
  %v389 = vadd.f32 %v288, %v388
  %v390 = vpop.f32.mrf.mxu0
  %v391 = vpop.f32.mrf.mxu0
  %v392 = vadd.f32 %v288, %v391
  %v393 = vpop.f32.mrf.mxu0
  %394 = vmatprep.mubr.bf16.mxu0 0
  %395 = vmatmul.mubr.bf16.gmra.mxu0 %v266
  %v396 = vpop.f32.mrf.mxu0
  %v397 = vadd.f32 %v288, %v396
  %v398 = vpop.f32.mrf.mxu0
  %v399 = vpop.f32.mrf.mxu0
  %v400 = vpop.f32.mrf.mxu0
  %401 = vdwg.mxu0
  %v402 = vmax.f32 %v373, 0.0
  %v403 = vmax.f32 %v376, 0.0
  %v404 = vmax.f32 %v381, 0.0
  %v405 = vmax.f32 %v384, 0.0
  %v406 = vmax.f32 %v389, 0.0
  %v407 = vmax.f32 %v392, 0.0
  %v408 = vmax.f32 %v397, 0.0
  %v409 = vld [vmem:[%s7] sm:$0xf]
  %v410 = vpack.c.bf16 %v403, %v402
  %v411 = vpack.c.bf16 %v405, %v404
  %v412 = vpack.c.bf16 %v407, %v406
  %v413 = vpack.c.bf16 %v408, %v408
  %v414 = vld [vmem:[%s8] sm:$0xff]
  %416 = vset.pattern.permute.xlu0 0
  %417 = vperm.xlu0 %416, %v414
  %v418 = vpop.permute.xlu0 %417
  %420 = vmatprep.subr.bf16.mxu0 0
  %421 = vmatpush1.bf16.xpose.msra.mxu0 0
  %422 = vmatprep.subr.bf16.mxu0 0
  %423 = vmatpush1.bf16.xpose.msra.mxu0 0
  %424 = vmatprep.subr.bf16.mxu0 0
  %425 = vmatpush1.bf16.xpose.msra.mxu0 0
  %426 = vmatprep.subr.bf16.mxu0 0
  %427 = vmatpush1.bf16.xpose.msra.mxu0 0
  %428 = vmatprep.subr.bf16.mxu0 0
  %429 = vmatpush1.bf16.xpose.msra.mxu0 %v413
  %430 = vmatprep.subr.bf16.mxu0 0
  %431 = vmatpush1.bf16.xpose.msra.mxu0 %v412
  %432 = vmatprep.subr.bf16.mxu0 0
  %433 = vmatpush1.bf16.xpose.msra.mxu0 %v411
  %434 = vmatprep.subr.bf16.mxu0 0
  %435 = vmatpush1.bf16.xpose.msra.mxu0 %v410
  %436 = vmatprep.subr.bf16.mxu0 0
  %437 = vmatpush2.bf16.xpose.msra.mxu0 0
  %438 = vmatprep.subr.bf16.mxu0 0
  %439 = vmatpush2.bf16.xpose.msra.mxu0 0
  %440 = vmatprep.subr.bf16.mxu0 0
  %441 = vmatpush2.bf16.xpose.msra.mxu0 0
  %442 = vmatprep.subr.bf16.mxu0 0
  %443 = vmatpush2.bf16.xpose.msra.mxu0 0
  %444 = vmatprep.subr.bf16.mxu0 0
  %445 = vmatpush2.bf16.xpose.msra.mxu0 0
  %446 = vmatprep.subr.bf16.mxu0 0
  %447 = vmatpush2.bf16.xpose.msra.mxu0 0
  %448 = vmatprep.subr.bf16.mxu0 0
  %449 = vmatpush2.bf16.xpose.msra.mxu0 0
  %450 = vmatprep.subr.bf16.mxu0 0
  %451 = vmatpush2.bf16.xpose.msra.mxu0 0
  %452 = vmatprep.mubr.bf16.mxu0 0
  %453 = vmatmul.mubr.bf16.gmra.mxu0 %v409
  %v454 = vpop.f32.mrf.mxu0
  %v455 = vadd.f32 %v418, %v454
  %v456 = vpop.f32.mrf.mxu0
  %v457 = vpop.f32.mrf.mxu0
  %v458 = vpop.f32.mrf.mxu0
  %459 = vdwg.mxu0
  %v460 = vtanh.pop %v455
  %vm461 = vcmask 408576
  %462 = vst.msk [vmem:[%s9] sm:$0xff] %vm461, %v460
  // Predicated region
  $region38: #{generative_gaussian_mlp_actor.1} parent=0 // pred_check
    _
  $region39: #{generative_gaussian_mlp_actor.1} parent=0 // pred_check_branch
    %464 = sbr.rel (0) target = $region41
  $region40: #{generative_gaussian_mlp_actor.1} parent=0 // pred_region
    _
  $region41: #{generative_gaussian_mlp_actor.1} parent=0 // pred_fallthru
    _
  // Predicated region
  $region42: #{generative_gaussian_mlp_actor.1} parent=0 // pred_check
    _
  $region43: #{generative_gaussian_mlp_actor.1} parent=0 // pred_check_branch
    %466 = sbr.rel (0) target = $region45
  $region44: #{generative_gaussian_mlp_actor.1} parent=0 // pred_region
    _
  $region45: #{generative_gaussian_mlp_actor.1} parent=0 // pred_fallthru
    _

</llo_original>
